<compile_context>
chip_gen: v7x
topology: tpu7x:2x2x1
jax: 0.10.0
libtpu: 0.0.40
codegen_flags: <defaults>
</compile_context>

<pallas_src>
import functools

import jax
import jax.numpy as jnp
from jax.experimental import pallas as pl
from jax.experimental.pallas import tpu as pltpu

_HIDDEN = (48, 24, 12, 1)          # layer output widths
_LANE = 128
_VMEM_BUDGET = 48 * 1024 * 1024    # conservative cap valid on v5e/v6e/v7x


def _round_up(x, m):
    return (x + m - 1) // m * m


def _param_layout(state_dim):
    """Row offsets / padded sizes for the packed parameter slab."""
    dims = (state_dim,) + _HIDDEN            # (D, 48, 24, 12, 1)
    offs, r = [], 0
    for out_f in _HIDDEN:
        offs.append(r)
        r = _round_up(r + out_f, 8)          # keep every layer 8-row aligned
    n_rows = r                               # 96
    n_cols = max(dims[:-1])                  # widest input dim = max(D, 48)
    return dims, tuple(offs), n_rows, n_cols


def pack_value_net_params(params, state_dim, param_dtype=jnp.float32):
    """Pack w1..w4 / b1..b4 into one transposed-weight slab + one bias column.

    Weights are stored (out_features, in_features) so the kernel computes
    h_T = W @ h_prev_T with the batch on the lane axis.  Call this ONCE when
    the parameters change — NOT inside the per-step forward path.
    """
    dims, offs, n_rows, n_cols = _param_layout(state_dim)
    w_packed = jnp.zeros((n_rows, n_cols), param_dtype)
    b_packed = jnp.zeros((n_rows, 1), jnp.float32)
    for li in range(4):
        in_f, out_f = dims[li], dims[li + 1]
        wi = params[f"w{li + 1}"]            # stored (in, out) like `x @ W`
        bi = params[f"b{li + 1}"]            # stored (1, out)
        r0 = offs[li]
        w_packed = w_packed.at[r0:r0 + out_f, :in_f].set(wi.T.astype(param_dtype))
        b_packed = b_packed.at[r0:r0 + out_f, 0].set(
            bi.reshape(out_f).astype(jnp.float32))
    return w_packed, b_packed


def _value_net_kernel(x_ref, w_ref, b_ref, out_ref, *, dims, offs):
    """Fused 4-layer MLP for one batch tile, batch on the lane axis.

    x_ref:   (TB, D)   streamed batch tile (native states dtype)
    w_ref:   (96, C)   packed transposed weights (compute dtype)
    b_ref:   (96, 1)   packed biases (f32)
    out_ref: (1, TB)   lane-dense value row (f32)
    """
    cdt = w_ref.dtype
    f32 = jnp.float32
    x = x_ref[...].astype(cdt)               # in-VMEM cast (free on the VPU)

    d0, d1, d2, d3 = dims[0], dims[1], dims[2], dims[3]
    o1, o2, o3, o4 = offs

    # layer 1: (48, D) . (TB, D)^T -> (48, TB)   (q @ k^T form, no transpose)
    w1 = w_ref[o1:o1 + d1, 0:d0]
    b1 = b_ref[o1:o1 + d1, :]
    h = jax.lax.dot_general(w1, x, (((1,), (1,)), ((), ())),
                            preferred_element_type=f32)
    h = jnp.tanh(h + b1).astype(cdt)          # (48, TB)

    # layer 2: (24, 48) @ (48, TB) -> (24, TB)
    w2 = w_ref[o2:o2 + d2, 0:d1]
    b2 = b_ref[o2:o2 + d2, :]
    h = jnp.tanh(jnp.dot(w2, h, preferred_element_type=f32) + b2).astype(cdt)

    # layer 3: (12, 24) @ (24, TB) -> (12, TB)
    w3 = w_ref[o3:o3 + d3, 0:d2]
    b3 = b_ref[o3:o3 + d3, :]
    h = jnp.tanh(jnp.dot(w3, h, preferred_element_type=f32) + b3).astype(cdt)

    # layer 4: (8, 12) zero-padded slab (rows 1..7 zero); row 0 is the value
    w4 = w_ref[o4:o4 + 8, 0:d3]
    b4 = b_ref[o4:o4 + 1, :]                  # (1, 1)
    v = jnp.dot(w4, h, preferred_element_type=f32)          # (8, TB)
    out_ref[...] = (v[0:1, :] + b4).astype(out_ref.dtype)   # lane-dense (1, TB)


def _default_min_tiles():
    """>=2 tiles on v7x so the parallel batch axis shards across both TCs."""
    try:
        kind = jax.devices()[0].device_kind.lower().replace(" ", "")
    except Exception:
        return 1
    return 2 if ("v7" in kind or "tpu7" in kind) else 1


def value_network_forward(states, w_packed, b_packed, *,
                          batch_tile=8192, min_tiles=None):
    """Run the fused ValueNetwork kernel.

    states:     (B, state_dim), streamed in its native dtype (no wrapper cast).
    w_packed:   (96, max(D, 48)) packed transposed weights (from
                pack_value_net_params, hoisted out of the hot path).
    b_packed:   (96, 1) packed biases (f32).
    batch_tile: target rows per grid step (rounded to a multiple of 128 and
                capped by the VMEM budget).
    min_tiles:  minimum grid size (defaults to 2 on v7x, 1 elsewhere).
    returns:    (B, 1) float32.
    """
    B, state_dim = states.shape
    dims, offs, n_rows, n_cols = _param_layout(state_dim)
    assert w_packed.shape == (n_rows, n_cols), (w_packed.shape, (n_rows, n_cols))
    assert b_packed.shape == (n_rows, 1), b_packed.shape

    if min_tiles is None:
        min_tiles = _default_min_tiles()

    # ---- tile sizing (VMEM-aware) -----------------------------------------
    itemsize = jnp.dtype(states.dtype).itemsize
    # Generous per-row VMEM estimate: double-buffered lane-padded input block,
    # double-buffered sublane-padded output block, f32 intermediates (x2 for
    # temporaries).
    per_row = 2 * _LANE * itemsize + 2 * 8 * 4 + 2 * (48 + 24 + 12 + 8) * 4
    param_bytes = (n_rows * n_cols + n_rows) * 4 * 2
    tb_cap = max(_LANE,
                 ((_VMEM_BUDGET - param_bytes - (1 << 20)) // per_row)
                 // _LANE * _LANE)

    n_tiles_target = max(int(min_tiles), pl.cdiv(B, int(batch_tile)))
    tb = _round_up(pl.cdiv(B, n_tiles_target), _LANE)   # lane-dense output tiles
    tb = min(tb, tb_cap)
    n_tiles = pl.cdiv(B, tb)                            # edge block handled by Pallas

    vmem_limit = int(min(max(per_row * tb + param_bytes + (2 << 20), 32 << 20),
                         56 << 20))

    flops = 2 * B * (state_dim * 48 + 48 * 24 + 24 * 12 + 12 * 1)
    transcendentals = B * (48 + 24 + 12)
    bytes_accessed = int(B * state_dim * itemsize + B * 4
                         + w_packed.size * jnp.dtype(w_packed.dtype).itemsize
                         + b_packed.size * 4)

    kernel = functools.partial(_value_net_kernel, dims=dims, offs=offs)

    out = pl.pallas_call(
        kernel,
        out_shape=jax.ShapeDtypeStruct((1, B), jnp.float32),
        grid=(n_tiles,),
        in_specs=[
            pl.BlockSpec((tb, state_dim), lambda i: (i, 0)),    # streamed batch tile
            pl.BlockSpec((n_rows, n_cols), lambda i: (0, 0)),   # packed weights (VMEM resident)
            pl.BlockSpec((n_rows, 1), lambda i: (0, 0)),        # packed biases
        ],
        out_specs=pl.BlockSpec((1, tb), lambda i: (0, i)),      # lane-dense output row
        compiler_params=pltpu.CompilerParams(
            dimension_semantics=("parallel",),
            vmem_limit_bytes=vmem_limit),
        cost_estimate=pl.CostEstimate(
            flops=flops, transcendentals=transcendentals,
            bytes_accessed=bytes_accessed),
    )(states, w_packed, b_packed)

    # (1, B) -> (B, 1): same flat order, pure reshape (no transpose/copy).
    return out.reshape(B, 1)


def init_value_network_params(key, state_dim):
    """Deterministic init mirroring torch.nn.Linear default:
    U(-1/sqrt(fan_in), 1/sqrt(fan_in)) for both weight and bias."""
    layer_dims = [state_dim, 48, 24, 12, 1]
    params = {}
    keys = jax.random.split(key, 2 * (len(layer_dims) - 1))
    for layer in range(len(layer_dims) - 1):
        fan_in, fan_out = layer_dims[layer], layer_dims[layer + 1]
        bound = 1.0 / jnp.sqrt(jnp.float32(fan_in))
        wk, bk = keys[2 * layer], keys[2 * layer + 1]
        params[f"w{layer + 1}"] = jax.random.uniform(
            wk, (fan_in, fan_out), jnp.float32, -bound, bound)
        params[f"b{layer + 1}"] = jax.random.uniform(
            bk, (1, fan_out), jnp.float32, -bound, bound)
    return params


def value_network_reference(states, params):
    """Pure-JAX reference for correctness checking."""
    h = jnp.tanh(states @ params["w1"] + params["b1"])
    h = jnp.tanh(h @ params["w2"] + params["b2"])
    h = jnp.tanh(h @ params["w3"] + params["b3"])
    return h @ params["w4"] + params["b4"]


if __name__ == "__main__":
    key = jax.random.PRNGKey(0)
    k_param, k1, k2, k3 = jax.random.split(key, 4)

    state_dim = 32
    params = init_value_network_params(k_param, state_dim)

    # Pack the parameters ONCE (hoisted out of the forward path).
    w_packed, b_packed = pack_value_net_params(params, state_dim)

    fwd = jax.jit(value_network_forward,
                  static_argnames=("batch_tile", "min_tiles"))

    # Case 1: tiny batch — single 128-lane tile, heavy padding via the
    # Pallas edge-block path (no wrapper-side jnp.pad).
    s1 = jax.random.normal(k1, (8, state_dim), dtype=jnp.float32)
    o1 = jax.block_until_ready(fwd(s1, w_packed, b_packed,
                                   batch_tile=8192, min_tiles=None))
    r1 = value_network_reference(s1, params)
    assert o1.shape == (8, 1), o1.shape
    err1 = float(jnp.max(jnp.abs(o1 - r1)))
    assert jnp.allclose(o1, r1, atol=1e-4, rtol=1e-4), f"max abs err = {err1}"

    # Case 2: evenly tiled batch — collapses to 1 tile (2 on v7x).
    s2 = jax.random.normal(k2, (1024, state_dim), dtype=jnp.float32)
    o2 = jax.block_until_ready(fwd(s2, w_packed, b_packed,
                                   batch_tile=8192, min_tiles=None))
    r2 = value_network_reference(s2, params)
    assert o2.shape == (1024, 1), o2.shape
    err2 = float(jnp.max(jnp.abs(o2 - r2)))
    assert jnp.allclose(o2, r2, atol=1e-4, rtol=1e-4), f"max abs err = {err2}"

    # Case 3: ragged batch with a small tile — exercises the partial edge
    # block on both input reads and output stores.
    s3 = jax.random.normal(k3, (600, state_dim), dtype=jnp.float32)
    o3 = jax.block_until_ready(fwd(s3, w_packed, b_packed,
                                   batch_tile=256, min_tiles=None))
    r3 = value_network_reference(s3, params)
    assert o3.shape == (600, 1), o3.shape
    err3 = float(jnp.max(jnp.abs(o3 - r3)))
    assert jnp.allclose(o3, r3, atol=1e-4, rtol=1e-4), f"max abs err = {err3}"

    print("KERNEL_OK")
</pallas_src>

<mosaic_0001>
module attributes {stable_mosaic.version = 11 : i64} {
  func.func @_value_net_kernel(%arg0: i32, %arg1: memref<128x32xf32, #tpu.memory_space<vmem>>, %arg2: memref<96x48xf32, #tpu.memory_space<vmem>>, %arg3: memref<96x1xf32, #tpu.memory_space<vmem>>, %arg4: memref<1x128xf32, #tpu.memory_space<vmem>>) attributes {dimension_semantics = [#tpu.dimension_semantics<parallel>], iteration_bounds = array<i64: 1>, scalar_prefetch = 0 : i64, scratch_operands = 0 : i64, tpu.core_type = #tpu.core_type<tc>, window_params = [{transform_indices = @transform_0, window_bounds = array<i64: 128, 32>}, {pipeline_mode = #tpu.pipeline_mode<synchronous>, transform_indices = @transform_1, window_bounds = array<i64: 96, 48>}, {pipeline_mode = #tpu.pipeline_mode<synchronous>, transform_indices = @transform_2, window_bounds = array<i64: 96, 1>}, {transform_indices = @transform_3, window_bounds = array<i64: 1, 128>}]} {
    %c0 = arith.constant 0 : index
    %c0_0 = arith.constant 0 : index
    %0 = vector.load %arg1[%c0, %c0_0] : memref<128x32xf32, #tpu.memory_space<vmem>>, vector<128x32xf32>
    %c0_1 = arith.constant 0 : index
    %c0_2 = arith.constant 0 : index
    %1 = vector.load %arg2[%c0_1, %c0_2] : memref<96x48xf32, #tpu.memory_space<vmem>>, vector<48x32xf32>
    %c0_3 = arith.constant 0 : index
    %c0_4 = arith.constant 0 : index
    %2 = vector.load %arg3[%c0_3, %c0_4] : memref<96x1xf32, #tpu.memory_space<vmem>>, vector<48x1xf32>
    %cst = arith.constant dense<0.000000e+00> : vector<48x128xf32>
    %3 = tpu.matmul %1, %0, %cst {dimension_numbers = #tpu.dot_dimension_numbers<[1], [1], [0], [0], [0, 0, 1, 0], [], []>} : vector<48x32xf32>, vector<128x32xf32>, vector<48x128xf32> -> vector<48x128xf32>
    %4 = vector.broadcast %2 : vector<48x1xf32> to vector<48x128xf32>
    %5 = arith.addf %3, %4 : vector<48x128xf32>
    %6 = math.tanh %5 : vector<48x128xf32>
    %c48 = arith.constant 48 : index
    %c0_5 = arith.constant 0 : index
    %7 = vector.load %arg2[%c48, %c0_5] : memref<96x48xf32, #tpu.memory_space<vmem>>, vector<24x48xf32>
    %c48_6 = arith.constant 48 : index
    %c0_7 = arith.constant 0 : index
    %8 = vector.load %arg3[%c48_6, %c0_7] : memref<96x1xf32, #tpu.memory_space<vmem>>, vector<24x1xf32>
    %cst_8 = arith.constant dense<0.000000e+00> : vector<24x128xf32>
    %9 = tpu.matmul %7, %6, %cst_8 {dimension_numbers = #tpu.dot_dimension_numbers<[1], [0], [0], [1], [0, 0, 1, 1], [], []>} : vector<24x48xf32>, vector<48x128xf32>, vector<24x128xf32> -> vector<24x128xf32>
    %10 = vector.broadcast %8 : vector<24x1xf32> to vector<24x128xf32>
    %11 = arith.addf %9, %10 : vector<24x128xf32>
    %12 = math.tanh %11 : vector<24x128xf32>
    %c72 = arith.constant 72 : index
    %c0_9 = arith.constant 0 : index
    %13 = vector.load %arg2[%c72, %c0_9] : memref<96x48xf32, #tpu.memory_space<vmem>>, vector<12x24xf32>
    %c72_10 = arith.constant 72 : index
    %c0_11 = arith.constant 0 : index
    %14 = vector.load %arg3[%c72_10, %c0_11] : memref<96x1xf32, #tpu.memory_space<vmem>>, vector<12x1xf32>
    %cst_12 = arith.constant dense<0.000000e+00> : vector<12x128xf32>
    %15 = tpu.matmul %13, %12, %cst_12 {dimension_numbers = #tpu.dot_dimension_numbers<[1], [0], [0], [1], [0, 0, 1, 1], [], []>} : vector<12x24xf32>, vector<24x128xf32>, vector<12x128xf32> -> vector<12x128xf32>
    %16 = vector.broadcast %14 : vector<12x1xf32> to vector<12x128xf32>
    %17 = arith.addf %15, %16 : vector<12x128xf32>
    %18 = math.tanh %17 : vector<12x128xf32>
    %c88 = arith.constant 88 : index
    %c0_13 = arith.constant 0 : index
    %19 = vector.load %arg2[%c88, %c0_13] : memref<96x48xf32, #tpu.memory_space<vmem>>, vector<8x12xf32>
    %c88_14 = arith.constant 88 : index
    %c0_15 = arith.constant 0 : index
    %20 = vector.load %arg3[%c88_14, %c0_15] : memref<96x1xf32, #tpu.memory_space<vmem>>, vector<1x1xf32>
    %cst_16 = arith.constant dense<0.000000e+00> : vector<8x128xf32>
    %21 = tpu.matmul %19, %18, %cst_16 {dimension_numbers = #tpu.dot_dimension_numbers<[1], [0], [0], [1], [0, 0, 1, 1], [], []>} : vector<8x12xf32>, vector<12x128xf32>, vector<8x128xf32> -> vector<8x128xf32>
    %22 = vector.extract_strided_slice %21 {offsets = [0, 0], sizes = [1, 128], strides = [1, 1]} : vector<8x128xf32> to vector<1x128xf32>
    %23 = vector.broadcast %20 : vector<1x1xf32> to vector<1x128xf32>
    %24 = arith.addf %22, %23 : vector<1x128xf32>
    %c0_17 = arith.constant 0 : index
    %c0_18 = arith.constant 0 : index
    %25 = vector.load %arg4[%c0_17, %c0_18] : memref<1x128xf32, #tpu.memory_space<vmem>>, vector<1x128xf32>
    tpu.vector_store %arg4[%c0_17, %c0_18], %24 {strides = array<i32>} : memref<1x128xf32, #tpu.memory_space<vmem>>, vector<1x128xf32>,
    return
  }
  func.func @transform_0(%arg0: i32) -> (i32, i32) {
    %c0_i32 = arith.constant 0 : i32
    %c0_i32_0 = arith.constant 0 : i32
    return %arg0, %c0_i32 : i32, i32
  }
  func.func @transform_1(%arg0: i32) -> (i32, i32) {
    %c0_i32 = arith.constant 0 : i32
    %c0_i32_0 = arith.constant 0 : i32
    %c0_i32_1 = arith.constant 0 : i32
    return %c0_i32, %c0_i32_0 : i32, i32
  }
  func.func @transform_2(%arg0: i32) -> (i32, i32) {
    %c0_i32 = arith.constant 0 : i32
    %c0_i32_0 = arith.constant 0 : i32
    %c0_i32_1 = arith.constant 0 : i32
    return %c0_i32, %c0_i32_0 : i32, i32
  }
  func.func @transform_3(%arg0: i32) -> (i32, i32) {
    %c0_i32 = arith.constant 0 : i32
    %c0_i32_0 = arith.constant 0 : i32
    return %c0_i32, %arg0 : i32, i32
  }
}

</mosaic_0001>

<llo_original>
// kernel: value_network_forward.1
$region0: #{value_network_forward.1}
  #allocation0 [shape = 'u32[]', space=smem, size = 0x4, offset = 0x4, fixed_abs, tag = 'smem constant byte address 0x4 - core index']
  #allocation1 [shape = 'u32[144,128]{1,0:T(1,128)}', space=vmem, size = 0x12000, scoped, tag = 'internal scratch']
  %s0 = inlined_call_operand.vmem [shape: f32[8,32], index: 0, kind: input, shape index: {}]
  %s1 = inlined_call_operand.vmem [shape: f32[96,48], index: 1, kind: input, shape index: {}]
  %s2 = inlined_call_operand.vmem [shape: f32[96,1], index: 2, kind: input, shape index: {}]
  %s3 = inlined_call_operand.hbm [shape: f32[1,8], index: 3, kind: output, shape index: {}]
  %s4 = sld [smem:[#allocation0]]
  $region22: #{value_network_forward.1} parent=0
    _
  %s6 = ssub.s32 1, %s4
  %s7 = scalar_select 0, %s6, %s4
  $region1: #{value_network_forward.1} parent=0
    #allocation2 [shape = 'u8[512]{0}', space=vmem, size = 0x400, scoped, tag = 'output window, operand 0, single buffered']
    #allocation3 [shape = 's32[1]{0}', space=sflag, size = 0x4, scoped, tag = 'scoped memory for value_network_forward.1']
    %8 = vsyncpa [#allocation3], 0
    // Predicated region
    $region2: #{value_network_forward.1} parent=1 // pred_check
      _
    $region3: #{value_network_forward.1} parent=1 // pred_check_branch
      %10 = sbr.rel (0) target = $region5
    $region4: #{value_network_forward.1} parent=1 // pred_region
      _
    $region5: #{value_network_forward.1} parent=1 // pred_fallthru
      _
    // Predicated region
    $region6: #{value_network_forward.1} parent=1 // pred_check
      _
    $region7: #{value_network_forward.1} parent=1 // pred_check_branch
      %12 = sbr.rel (0) target = $region9
    $region8: #{value_network_forward.1} parent=1 // pred_region
      _
    $region9: #{value_network_forward.1} parent=1 // pred_fallthru
      _
    // Predicated region
    $region10: #{value_network_forward.1} parent=1 // pred_check
      _
    $region11: #{value_network_forward.1} parent=1 // pred_check_branch
      %14 = sbr.rel (0) target = $region13
    $region12: #{value_network_forward.1} parent=1 // pred_region
      _
    $region13: #{value_network_forward.1} parent=1 // pred_fallthru
      _
    %v15 = vld [vmem:[%s0] sm:$0xff]
    %v16 = vld [vmem:[%s0 + $0x8] sm:$0xff]
    %v17 = vld [vmem:[%s0 + $0x10] sm:$0xff]
    %v18 = vld [vmem:[%s0 + $0x18] sm:$0xff]
    %v19 = vld [vmem:[%s0 + $0x20] sm:$0xff]
    %v20 = vld [vmem:[%s0 + $0x28] sm:$0xff]
    %v21 = vld [vmem:[%s0 + $0x30] sm:$0xff]
    %v22 = vld [vmem:[%s0 + $0x38] sm:$0xff]
    %v23 = vld [vmem:[%s0 + $0x40] sm:$0xff]
    %v24 = vld [vmem:[%s0 + $0x48] sm:$0xff]
    %v25 = vld [vmem:[%s0 + $0x50] sm:$0xff]
    %v26 = vld [vmem:[%s0 + $0x58] sm:$0xff]
    %v27 = vld [vmem:[%s0 + $0x60] sm:$0xff]
    %v28 = vld [vmem:[%s0 + $0x68] sm:$0xff]
    %v29 = vld [vmem:[%s0 + $0x70] sm:$0xff]
    %v30 = vld [vmem:[%s0 + $0x78] sm:$0xff]
    %v31 = vld [vmem:[%s1] sm:$0xff]
    %v32 = vld [vmem:[%s1 + $0x8] sm:$0xff]
    %v33 = vld [vmem:[%s1 + $0x10] sm:$0xff]
    %v34 = vld [vmem:[%s1 + $0x18] sm:$0xff]
    %v35 = vld [vmem:[%s1 + $0x20] sm:$0xff]
    %v36 = vld [vmem:[%s1 + $0x28] sm:$0xff]
    %v37 = vld [vmem:[%s2] sm:$0xff]
    %v38 = vld [vmem:[%s2 + $0x8] sm:$0xff]
    %v39 = vld [vmem:[%s2 + $0x10] sm:$0xff]
    %v40 = vld [vmem:[%s2 + $0x18] sm:$0xff]
    %v41 = vld [vmem:[%s2 + $0x20] sm:$0xff]
    %v42 = vld [vmem:[%s2 + $0x28] sm:$0xff]
    %44 = vset.pattern.permute.xlu0 0
    %45 = vperm.xlu0 %44, %v37
    %v46 = vpop.permute.xlu0 %45
    %49 = vset.pattern.permute.xlu0 0
    %50 = vperm.xlu0 %49, %v38
    %v51 = vpop.permute.xlu0 %50
    %54 = vset.pattern.permute.xlu0 0
    %55 = vperm.xlu0 %54, %v39
    %v56 = vpop.permute.xlu0 %55
    %59 = vset.pattern.permute.xlu0 0
    %60 = vperm.xlu0 %59, %v40
    %v61 = vpop.permute.xlu0 %60
    %64 = vset.pattern.permute.xlu0 0
    %65 = vperm.xlu0 %64, %v41
    %v66 = vpop.permute.xlu0 %65
    %69 = vset.pattern.permute.xlu0 0
    %70 = vperm.xlu0 %69, %v42
    %v71 = vpop.permute.xlu0 %70
    %vm73 = vcmask 261120
    %v75 = vsel %vm73, %v31, 0
    %v78 = vsel %vm73, %v32, 0
    %v81 = vsel %vm73, %v33, 0
    %v84 = vsel %vm73, %v34, 0
    %v87 = vsel %vm73, %v35, 0
    %v90 = vsel %vm73, %v36, 0
    %v93 = vsel %vm73, %v15, 0
    %v96 = vsel %vm73, %v16, 0
    %v99 = vsel %vm73, %v17, 0
    %v102 = vsel %vm73, %v18, 0
    %v105 = vsel %vm73, %v19, 0
    %v108 = vsel %vm73, %v20, 0
    %v111 = vsel %vm73, %v21, 0
    %v114 = vsel %vm73, %v22, 0
    %v117 = vsel %vm73, %v23, 0
    %v120 = vsel %vm73, %v24, 0
    %v123 = vsel %vm73, %v25, 0
    %v126 = vsel %vm73, %v26, 0
    %v129 = vsel %vm73, %v27, 0
    %v132 = vsel %vm73, %v28, 0
    %v135 = vsel %vm73, %v29, 0
    %v138 = vsel %vm73, %v30, 0
    %140 = vmatprep.subr.mxu0 0.0
    %141 = vmatpush1.xpose.msra.mxu0 %v93
    %142 = vmatprep.subr.mxu0 0.0
    %143 = vmatpush1.xpose.msra.mxu0 %v96
    %144 = vmatprep.subr.mxu0 0.0
    %145 = vmatpush1.xpose.msra.mxu0 %v99
    %146 = vmatprep.subr.mxu0 0.0
    %147 = vmatpush1.xpose.msra.mxu0 %v102
    %148 = vmatprep.subr.mxu0 0.0
    %149 = vmatpush1.xpose.msra.mxu0 %v105
    %150 = vmatprep.subr.mxu0 0.0
    %151 = vmatpush1.xpose.msra.mxu0 %v108
    %152 = vmatprep.subr.mxu0 0.0
    %153 = vmatpush1.xpose.msra.mxu0 %v111
    %154 = vmatprep.subr.mxu0 0.0
    %155 = vmatpush1.xpose.msra.mxu0 %v114
    %156 = vmatprep.subr.mxu0 0.0
    %157 = vmatpush1.xpose.msra.mxu0 %v117
    %158 = vmatprep.subr.mxu0 0.0
    %159 = vmatpush1.xpose.msra.mxu0 %v120
    %160 = vmatprep.subr.mxu0 0.0
    %161 = vmatpush1.xpose.msra.mxu0 %v123
    %162 = vmatprep.subr.mxu0 0.0
    %163 = vmatpush1.xpose.msra.mxu0 %v126
    %164 = vmatprep.subr.mxu0 0.0
    %165 = vmatpush1.xpose.msra.mxu0 %v129
    %166 = vmatprep.subr.mxu0 0.0
    %167 = vmatpush1.xpose.msra.mxu0 %v132
    %168 = vmatprep.subr.mxu0 0.0
    %169 = vmatpush1.xpose.msra.mxu0 %v135
    %170 = vmatprep.subr.mxu0 0.0
    %171 = vmatpush1.xpose.msra.mxu0 %v138
    %172 = vmatprep.subr.mxu0 0.0
    %173 = vmatpush1.xpose.msra.mxu0 0.0
    %174 = vmatprep.subr.mxu0 0.0
    %175 = vmatpush1.xpose.msra.mxu0 0.0
    %176 = vmatprep.subr.mxu0 0.0
    %177 = vmatpush1.xpose.msra.mxu0 0.0
    %178 = vmatprep.subr.mxu0 0.0
    %179 = vmatpush1.xpose.msra.mxu0 0.0
    %180 = vmatprep.subr.mxu0 0.0
    %181 = vmatpush1.xpose.msra.mxu0 0.0
    %182 = vmatprep.subr.mxu0 0.0
    %183 = vmatpush1.xpose.msra.mxu0 0.0
    %184 = vmatprep.subr.mxu0 0.0
    %185 = vmatpush1.xpose.msra.mxu0 0.0
    %186 = vmatprep.subr.mxu0 0.0
    %187 = vmatpush1.xpose.msra.mxu0 0.0
    %188 = vmatprep.subr.mxu0 0.0
    %189 = vmatpush1.xpose.msra.mxu0 0.0
    %190 = vmatprep.subr.mxu0 0.0
    %191 = vmatpush1.xpose.msra.mxu0 0.0
    %192 = vmatprep.subr.mxu0 0.0
    %193 = vmatpush1.xpose.msra.mxu0 0.0
    %194 = vmatprep.subr.mxu0 0.0
    %195 = vmatpush1.xpose.msra.mxu0 0.0
    %196 = vmatprep.subr.mxu0 0.0
    %197 = vmatpush1.xpose.msra.mxu0 0.0
    %198 = vmatprep.subr.mxu0 0.0
    %199 = vmatpush1.xpose.msra.mxu0 0.0
    %200 = vmatprep.subr.mxu0 0.0
    %201 = vmatpush1.xpose.msra.mxu0 0.0
    %202 = vmatprep.subr.mxu0 0.0
    %203 = vmatpush1.xpose.msra.mxu0 0.0
    %204 = vmatprep.mubr.f32.mxu0 0.0
    %205 = vmatmul.mubr.f32.gmra.mrb[0].mxu0 %v75
    %v206 = vpop.f32.mrb[0].mxu0
    %v207 = vadd.f32 %v46, %v206
    %v208 = vpop.f32.mrb[0].mxu0
    %209 = vmatprep.mubr.f32.mxu0 0.0
    %210 = vmatmul.mubr.f32.gmra.mrb[0].mxu0 %v78
    %v211 = vpop.f32.mrb[0].mxu0
    %v212 = vadd.f32 %v51, %v211
    %v213 = vpop.f32.mrb[0].mxu0
    %214 = vmatprep.mubr.f32.mxu0 0.0
    %215 = vmatmul.mubr.f32.gmra.mrb[0].mxu0 %v81
    %v216 = vpop.f32.mrb[0].mxu0
    %v217 = vadd.f32 %v56, %v216
    %v218 = vpop.f32.mrb[0].mxu0
    %219 = vmatprep.mubr.f32.mxu0 0.0
    %220 = vmatmul.mubr.f32.gmra.mrb[0].mxu0 %v84
    %v221 = vpop.f32.mrb[0].mxu0
    %v222 = vadd.f32 %v61, %v221
    %v223 = vpop.f32.mrb[0].mxu0
    %224 = vmatprep.mubr.f32.mxu0 0.0
    %225 = vmatmul.mubr.f32.gmra.mrb[0].mxu0 %v87
    %v226 = vpop.f32.mrb[0].mxu0
    %v227 = vadd.f32 %v66, %v226
    %v228 = vpop.f32.mrb[0].mxu0
    %229 = vmatprep.mubr.f32.mxu0 0.0
    %230 = vmatmul.mubr.f32.gmra.mrb[0].mxu0 %v90
    %v231 = vpop.f32.mrb[0].mxu0
    %v232 = vadd.f32 %v71, %v231
    %v233 = vpop.f32.mrb[0].mxu0
    %234 = vdwg.mxu0
    %v235 = vtanh.pop %v207
    %v236 = vtanh.pop %v212
    %v237 = vtanh.pop %v217
    %v238 = vtanh.pop %v222
    %v239 = vtanh.pop %v227
    %v240 = vtanh.pop %v232
    %v241 = vld [vmem:[%s1 + $0x30] sm:$0xff]
    %v242 = vld [vmem:[%s1 + $0x38] sm:$0xff]
    %v243 = vld [vmem:[%s1 + $0x40] sm:$0xff]
    %v244 = vld [vmem:[%s2 + $0x30] sm:$0xff]
    %v245 = vld [vmem:[%s2 + $0x38] sm:$0xff]
    %v246 = vld [vmem:[%s2 + $0x40] sm:$0xff]
    %248 = vset.pattern.permute.xlu0 0
    %249 = vperm.xlu0 %248, %v244
    %v250 = vpop.permute.xlu0 %249
    %253 = vset.pattern.permute.xlu0 0
    %254 = vperm.xlu0 %253, %v245
    %v255 = vpop.permute.xlu0 %254
    %258 = vset.pattern.permute.xlu0 0
    %259 = vperm.xlu0 %258, %v246
    %v260 = vpop.permute.xlu0 %259
    %vm262 = vcmask 392192
    %v264 = vsel %vm262, %v241, 0
    %v267 = vsel %vm262, %v242, 0
    %v270 = vsel %vm262, %v243, 0
    %272 = vmatprep.subr.mxu0 0.0
    %273 = vmatpush1.msra.mxu0 %v235
    %274 = vmatprep.subr.mxu0 0.0
    %275 = vmatpush1.msra.mxu0 %v236
    %276 = vmatprep.subr.mxu0 0.0
    %277 = vmatpush1.msra.mxu0 %v237
    %278 = vmatprep.subr.mxu0 0.0
    %279 = vmatpush1.msra.mxu0 %v238
    %280 = vmatprep.subr.mxu0 0.0
    %281 = vmatpush1.msra.mxu0 %v239
    %282 = vmatprep.subr.mxu0 0.0
    %283 = vmatpush1.msra.mxu0 %v240
    %284 = vmatprep.subr.mxu0 0.0
    %285 = vmatpush1.msra.mxu0 0.0
    %286 = vmatprep.subr.mxu0 0.0
    %287 = vmatpush1.msra.mxu0 0.0
    %288 = vmatprep.subr.mxu0 0.0
    %289 = vmatpush1.msra.mxu0 0.0
    %290 = vmatprep.subr.mxu0 0.0
    %291 = vmatpush1.msra.mxu0 0.0
    %292 = vmatprep.subr.mxu0 0.0
    %293 = vmatpush1.msra.mxu0 0.0
    %294 = vmatprep.subr.mxu0 0.0
    %295 = vmatpush1.msra.mxu0 0.0
    %296 = vmatprep.subr.mxu0 0.0
    %297 = vmatpush1.msra.mxu0 0.0
    %298 = vmatprep.subr.mxu0 0.0
    %299 = vmatpush1.msra.mxu0 0.0
    %300 = vmatprep.subr.mxu0 0.0
    %301 = vmatpush1.msra.mxu0 0.0
    %302 = vmatprep.subr.mxu0 0.0
    %303 = vmatpush1.msra.mxu0 0.0
    %304 = vmatprep.subr.mxu0 0.0
    %305 = vmatpush1.msra.mxu0 0.0
    %306 = vmatprep.subr.mxu0 0.0
    %307 = vmatpush1.msra.mxu0 0.0
    %308 = vmatprep.subr.mxu0 0.0
    %309 = vmatpush1.msra.mxu0 0.0
    %310 = vmatprep.subr.mxu0 0.0
    %311 = vmatpush1.msra.mxu0 0.0
    %312 = vmatprep.subr.mxu0 0.0
    %313 = vmatpush1.msra.mxu0 0.0
    %314 = vmatprep.subr.mxu0 0.0
    %315 = vmatpush1.msra.mxu0 0.0
    %316 = vmatprep.subr.mxu0 0.0
    %317 = vmatpush1.msra.mxu0 0.0
    %318 = vmatprep.subr.mxu0 0.0
    %319 = vmatpush1.msra.mxu0 0.0
    %320 = vmatprep.subr.mxu0 0.0
    %321 = vmatpush1.msra.mxu0 0.0
    %322 = vmatprep.subr.mxu0 0.0
    %323 = vmatpush1.msra.mxu0 0.0
    %324 = vmatprep.subr.mxu0 0.0
    %325 = vmatpush1.msra.mxu0 0.0
    %326 = vmatprep.subr.mxu0 0.0
    %327 = vmatpush1.msra.mxu0 0.0
    %328 = vmatprep.subr.mxu0 0.0
    %329 = vmatpush1.msra.mxu0 0.0
    %330 = vmatprep.subr.mxu0 0.0
    %331 = vmatpush1.msra.mxu0 0.0
    %332 = vmatprep.subr.mxu0 0.0
    %333 = vmatpush1.msra.mxu0 0.0
    %334 = vmatprep.subr.mxu0 0.0
    %335 = vmatpush1.msra.mxu0 0.0
    %336 = vmatprep.mubr.f32.mxu0 0.0
    %337 = vmatmul.mubr.f32.gmra.mrb[0].mxu0 %v264
    %v338 = vpop.f32.mrb[0].mxu0
    %v339 = vadd.f32 %v250, %v338
    %v340 = vpop.f32.mrb[0].mxu0
    %341 = vmatprep.mubr.f32.mxu0 0.0
    %342 = vmatmul.mubr.f32.gmra.mrb[0].mxu0 %v267
    %v343 = vpop.f32.mrb[0].mxu0
    %v344 = vadd.f32 %v255, %v343
    %v345 = vpop.f32.mrb[0].mxu0
    %346 = vmatprep.mubr.f32.mxu0 0.0
    %347 = vmatmul.mubr.f32.gmra.mrb[0].mxu0 %v270
    %v348 = vpop.f32.mrb[0].mxu0
    %v349 = vadd.f32 %v260, %v348
    %v350 = vpop.f32.mrb[0].mxu0
    %351 = vdwg.mxu0
    %v352 = vtanh.pop %v339
    %v353 = vtanh.pop %v344
    %v354 = vtanh.pop %v349
    %v355 = vld [vmem:[%s1 + $0x48] sm:$0xff]
    %v356 = vld [vmem:[%s1 + $0x50] sm:$0xf]
    %v357 = vld [vmem:[%s2 + $0x48] sm:$0xff]
    %v358 = vld [vmem:[%s2 + $0x50] sm:$0xf]
    %360 = vset.pattern.permute.xlu0 0
    %361 = vperm.xlu0 %360, %v357
    %v362 = vpop.permute.xlu0 %361
    %365 = vset.pattern.permute.xlu0 0
    %366 = vperm.xlu0 %365, %v358
    %v367 = vpop.permute.xlu0 %366
    %vm369 = vcmask 195584
    %v371 = vsel %vm369, %v355, 0
    %v374 = vsel %vm369, %v356, 0
    %376 = vmatprep.subr.mxu0 0.0
    %377 = vmatpush1.msra.mxu0 %v352
    %378 = vmatprep.subr.mxu0 0.0
    %379 = vmatpush1.msra.mxu0 %v353
    %380 = vmatprep.subr.mxu0 0.0
    %381 = vmatpush1.msra.mxu0 %v354
    %382 = vmatprep.subr.mxu0 0.0
    %383 = vmatpush1.msra.mxu0 0.0
    %384 = vmatprep.subr.mxu0 0.0
    %385 = vmatpush1.msra.mxu0 0.0
    %386 = vmatprep.subr.mxu0 0.0
    %387 = vmatpush1.msra.mxu0 0.0
    %388 = vmatprep.subr.mxu0 0.0
    %389 = vmatpush1.msra.mxu0 0.0
    %390 = vmatprep.subr.mxu0 0.0
    %391 = vmatpush1.msra.mxu0 0.0
    %392 = vmatprep.subr.mxu0 0.0
    %393 = vmatpush1.msra.mxu0 0.0
    %394 = vmatprep.subr.mxu0 0.0
    %395 = vmatpush1.msra.mxu0 0.0
    %396 = vmatprep.subr.mxu0 0.0
    %397 = vmatpush1.msra.mxu0 0.0
    %398 = vmatprep.subr.mxu0 0.0
    %399 = vmatpush1.msra.mxu0 0.0
    %400 = vmatprep.subr.mxu0 0.0
    %401 = vmatpush1.msra.mxu0 0.0
    %402 = vmatprep.subr.mxu0 0.0
    %403 = vmatpush1.msra.mxu0 0.0
    %404 = vmatprep.subr.mxu0 0.0
    %405 = vmatpush1.msra.mxu0 0.0
    %406 = vmatprep.subr.mxu0 0.0
    %407 = vmatpush1.msra.mxu0 0.0
    %408 = vmatprep.subr.mxu0 0.0
    %409 = vmatpush1.msra.mxu0 0.0
    %410 = vmatprep.subr.mxu0 0.0
    %411 = vmatpush1.msra.mxu0 0.0
    %412 = vmatprep.subr.mxu0 0.0
    %413 = vmatpush1.msra.mxu0 0.0
    %414 = vmatprep.subr.mxu0 0.0
    %415 = vmatpush1.msra.mxu0 0.0
    %416 = vmatprep.subr.mxu0 0.0
    %417 = vmatpush1.msra.mxu0 0.0
    %418 = vmatprep.subr.mxu0 0.0
    %419 = vmatpush1.msra.mxu0 0.0
    %420 = vmatprep.subr.mxu0 0.0
    %421 = vmatpush1.msra.mxu0 0.0
    %422 = vmatprep.subr.mxu0 0.0
    %423 = vmatpush1.msra.mxu0 0.0
    %424 = vmatprep.subr.mxu0 0.0
    %425 = vmatpush1.msra.mxu0 0.0
    %426 = vmatprep.subr.mxu0 0.0
    %427 = vmatpush1.msra.mxu0 0.0
    %428 = vmatprep.subr.mxu0 0.0
    %429 = vmatpush1.msra.mxu0 0.0
    %430 = vmatprep.subr.mxu0 0.0
    %431 = vmatpush1.msra.mxu0 0.0
    %432 = vmatprep.subr.mxu0 0.0
    %433 = vmatpush1.msra.mxu0 0.0
    %434 = vmatprep.subr.mxu0 0.0
    %435 = vmatpush1.msra.mxu0 0.0
    %436 = vmatprep.subr.mxu0 0.0
    %437 = vmatpush1.msra.mxu0 0.0
    %438 = vmatprep.subr.mxu0 0.0
    %439 = vmatpush1.msra.mxu0 0.0
    %440 = vmatprep.mubr.f32.mxu0 0.0
    %441 = vmatmul.mubr.f32.gmra.mrb[0].mxu0 %v371
    %v442 = vpop.f32.mrb[0].mxu0
    %v443 = vadd.f32 %v362, %v442
    %v444 = vpop.f32.mrb[0].mxu0
    %445 = vmatprep.mubr.f32.mxu0 0.0
    %446 = vmatmul.mubr.f32.gmra.mrb[0].mxu0 %v374
    %v447 = vpop.f32.mrb[0].mxu0
    %v448 = vadd.f32 %v367, %v447
    %v449 = vpop.f32.mrb[0].mxu0
    %450 = vdwg.mxu0
    %v451 = vtanh.pop %v443
    %v452 = vtanh.pop %v448
    %v453 = vld [vmem:[%s1 + $0x58] sm:$0xff]
    %v454 = vld [vmem:[%s2 + $0x58] sm:$0x1]
    %vm455 = vcmask 97280
    %v457 = vsel %vm455, %v453, 0
    %vm459 = vcmask 1043456
    %v461 = vsel %vm459, %v452, 0
    %463 = vmatprep.subr.mxu0 0.0
    %464 = vmatpush1.msra.mxu0 %v451
    %465 = vmatprep.subr.mxu0 0.0
    %466 = vmatpush1.msra.mxu0 %v461
    %467 = vmatprep.subr.mxu0 0.0
    %468 = vmatpush1.msra.mxu0 0.0
    %469 = vmatprep.subr.mxu0 0.0
    %470 = vmatpush1.msra.mxu0 0.0
    %471 = vmatprep.subr.mxu0 0.0
    %472 = vmatpush1.msra.mxu0 0.0
    %473 = vmatprep.subr.mxu0 0.0
    %474 = vmatpush1.msra.mxu0 0.0
    %475 = vmatprep.subr.mxu0 0.0
    %476 = vmatpush1.msra.mxu0 0.0
    %477 = vmatprep.subr.mxu0 0.0
    %478 = vmatpush1.msra.mxu0 0.0
    %479 = vmatprep.subr.mxu0 0.0
    %480 = vmatpush1.msra.mxu0 0.0
    %481 = vmatprep.subr.mxu0 0.0
    %482 = vmatpush1.msra.mxu0 0.0
    %483 = vmatprep.subr.mxu0 0.0
    %484 = vmatpush1.msra.mxu0 0.0
    %485 = vmatprep.subr.mxu0 0.0
    %486 = vmatpush1.msra.mxu0 0.0
    %487 = vmatprep.subr.mxu0 0.0
    %488 = vmatpush1.msra.mxu0 0.0
    %489 = vmatprep.subr.mxu0 0.0
    %490 = vmatpush1.msra.mxu0 0.0
    %491 = vmatprep.subr.mxu0 0.0
    %492 = vmatpush1.msra.mxu0 0.0
    %493 = vmatprep.subr.mxu0 0.0
    %494 = vmatpush1.msra.mxu0 0.0
    %495 = vmatprep.subr.mxu0 0.0
    %496 = vmatpush1.msra.mxu0 0.0
    %497 = vmatprep.subr.mxu0 0.0
    %498 = vmatpush1.msra.mxu0 0.0
    %499 = vmatprep.subr.mxu0 0.0
    %500 = vmatpush1.msra.mxu0 0.0
    %501 = vmatprep.subr.mxu0 0.0
    %502 = vmatpush1.msra.mxu0 0.0
    %503 = vmatprep.subr.mxu0 0.0
    %504 = vmatpush1.msra.mxu0 0.0
    %505 = vmatprep.subr.mxu0 0.0
    %506 = vmatpush1.msra.mxu0 0.0
    %507 = vmatprep.subr.mxu0 0.0
    %508 = vmatpush1.msra.mxu0 0.0
    %509 = vmatprep.subr.mxu0 0.0
    %510 = vmatpush1.msra.mxu0 0.0
    %511 = vmatprep.subr.mxu0 0.0
    %512 = vmatpush1.msra.mxu0 0.0
    %513 = vmatprep.subr.mxu0 0.0
    %514 = vmatpush1.msra.mxu0 0.0
    %515 = vmatprep.subr.mxu0 0.0
    %516 = vmatpush1.msra.mxu0 0.0
    %517 = vmatprep.subr.mxu0 0.0
    %518 = vmatpush1.msra.mxu0 0.0
    %519 = vmatprep.subr.mxu0 0.0
    %520 = vmatpush1.msra.mxu0 0.0
    %521 = vmatprep.subr.mxu0 0.0
    %522 = vmatpush1.msra.mxu0 0.0
    %523 = vmatprep.subr.mxu0 0.0
    %524 = vmatpush1.msra.mxu0 0.0
    %525 = vmatprep.subr.mxu0 0.0
    %526 = vmatpush1.msra.mxu0 0.0
    %527 = vmatprep.mubr.f32.mxu0 0.0
    %528 = vmatmul.mubr.f32.gmra.mrb[0].mxu0 %v457
    %v529 = vpop.f32.mrb[0].mxu0
    %v530 = vadd.f32 0.0, %v529
    %v531 = vpop.f32.mrb[0].mxu0
    %532 = vdwg.mxu0
    %534 = vset.pattern.permute.xlu0 0
    %535 = vperm.xlu0 %534, %v454
    %v536 = vpop.permute.xlu0 %535
    %v538 = vadd.f32 %v530, %v536
    %539 = vst [vmem:[#allocation2] sm:$0x1] %v538
    // Predicated region
    $region14: #{value_network_forward.1} parent=1 // pred_check
      _
    $region15: #{value_network_forward.1} parent=1 // pred_check_branch
      %541 = sbr.rel (0) target = $region17
    $region16: #{value_network_forward.1} parent=1 // pred_region
      %s543 = ssub.s32 16, 16
      %544 = vsyncadd [#allocation3], %s543
      %s546 = sshll.u32 [#allocation2], 4
      %s547 = int_to_ptr.vmem [resolvable:$true] %s546
      %549 = dma.vmem_to_hbm [thread:$0]  %s547, 16, %s3, [#allocation3]
    $region17: #{value_network_forward.1} parent=1 // pred_fallthru
      _
    // Predicated region
    $region18: #{value_network_forward.1} parent=1 // pred_check
      _
    $region19: #{value_network_forward.1} parent=1 // pred_check_branch
      %551 = sbr.rel (0) target = $region21
    $region20: #{value_network_forward.1} parent=1 // pred_region
      %552 = dma.done [#allocation3], 16
    $region21: #{value_network_forward.1} parent=1 // pred_fallthru
      _
    %553 = vsyncpa [#allocation3], 1

</llo_original>
